<compile_context>
chip_gen: v7x
topology: tpu7x:2x2x1
jax: 0.10.0
libtpu: 0.0.40
codegen_flags: <defaults>
</compile_context>

<pallas_src>
import math

import jax
import jax.numpy as jnp
import numpy as np
from jax import lax
from jax.experimental import pallas as pl
from jax.experimental.pallas import tpu as pltpu

# ---------------------------------------------------------------------------
# Module hyper-parameters (QuerySHLayer.__init__ arguments)
# ---------------------------------------------------------------------------
SH_LMAX = 2                    # -> irreps "1x0e+1x1e+1x2e", dim = 9
NUMBER_OF_BASIS = 8
FIELD_CUTOFF = 0.9
IRREP_NORMALIZATION = "norm"   # raw e3nn polynomials (per-l norm == 1)

SH_DIM = (SH_LMAX + 1) ** 2    # 9
SH_NO_L0 = SH_DIM - 1          # 8 — the l=0 channel is constant 1, not stored
NUM_FEAT = SH_NO_L0 + NUMBER_OF_BASIS   # 16 channels in the fused bf16 slab
RADIUS = FIELD_CUTOFF * 1.2
RADIUS2 = RADIUS * RADIUS
EPS = 1e-12
SQRT3 = math.sqrt(3.0)
# e3nn smooth_finite constant, times the .mul(number_of_basis ** 0.5) in forward
EMB_CONST = 1.14136 * math.exp(2.0) * math.sqrt(NUMBER_OF_BASIS)
# cutoff=True: centers = linspace(0, cutoff, B+2)[1:-1], step = cutoff/(B+1)
EMB_STEP = FIELD_CUTOFF / (NUMBER_OF_BASIS + 1)
INV_EMB_STEP = 1.0 / EMB_STEP
# Distinct pad coords: padded-x vs padded-y pairs are ~2e9 apart -> mask == 0,
# so the padded mask/feat arrays can be consumed without an un-padding slice.
X_PAD = 1.0e9
Y_PAD = -1.0e9
# Clamp for the radial-basis denominator: exp(-2/1e-3) underflows to exactly 0
# in f32, so one clamp replaces the compare + two selects of the exact form.
DENOM_CLAMP = 1e-3


def query_sh_kernel(x_ref, y_ref, feat_ref, mask_ref):
    # x_ref: [3, tn]   y_ref: [tq, 3]
    # feat_ref: [NUM_FEAT, tq, tn] bf16   mask_ref: [tq, tn] int8
    xs = x_ref[...]
    ys = y_ref[...]

    # edge_vec = y[src] - x[dst]  (dense over the tile's pairs)
    dx = ys[:, 0:1] - xs[0:1, :]          # [tq, tn]
    dy = ys[:, 1:2] - xs[1:2, :]
    dz = ys[:, 2:3] - xs[2:3, :]

    dist2 = dx * dx + dy * dy + dz * dz

    # radius() membership mask — squared compare, stored as int8 (1 B/pair)
    mask_ref[...] = jnp.where(dist2 <= RADIUS2, 1, 0).astype(jnp.int8)

    # normalize=True: one rsqrt replaces sqrt + reciprocal (eps-guarded)
    inv_n = lax.rsqrt(jnp.maximum(dist2, EPS * EPS))
    dist = dist2 * inv_n                  # edge_length (VALU mul, no extra sqrt)
    ux = dx * inv_n
    uy = dy * inv_n
    uz = dz * inv_n

    # e3nn real spherical harmonics, normalization='norm' (raw polynomials).
    # The constant l=0 channel is appended after edge compaction, not stored.
    feat_ref[0] = ux.astype(jnp.bfloat16)                        # l=1
    feat_ref[1] = uy.astype(jnp.bfloat16)
    feat_ref[2] = uz.astype(jnp.bfloat16)
    feat_ref[3] = (SQRT3 * ux * uz).astype(jnp.bfloat16)         # l=2
    feat_ref[4] = (SQRT3 * ux * uy).astype(jnp.bfloat16)
    feat_ref[5] = (uy * uy - 0.5 * (ux * ux + uz * uz)).astype(jnp.bfloat16)
    feat_ref[6] = (SQRT3 * uy * uz).astype(jnp.bfloat16)
    feat_ref[7] = ((SQRT3 / 2.0) * (uz * uz - ux * ux)).astype(jnp.bfloat16)

    # soft_one_hot_linspace(basis='smooth_finite', cutoff=True) * sqrt(B)
    # Fused form: sus(1+d)*sus(1-d) == exp(-2/(1-d^2)) for |d| < 1, else 0.
    # Clamping the denominator makes the "outside support" branch fall out of
    # exp underflow, and the divide is kept on the EUP via approx reciprocal.
    d_scaled = dist * INV_EMB_STEP        # divide-by-step hoisted out of the loop
    for k in range(NUMBER_OF_BASIS):
        d = d_scaled - float(k + 1)
        denom = jnp.maximum(1.0 - d * d, DENOM_CLAMP)
        val = EMB_CONST * jnp.exp(-2.0 * pl.reciprocal(denom, approx=True))
        feat_ref[SH_NO_L0 + k] = val.astype(jnp.bfloat16)


def _round_up(n, m):
    return (n + m - 1) // m * m


def query_sh_dense(x, y_flat, *, tq_max=128, tn_max=1024):
    """Dense pairwise kernel. x: [Nx, 3], y_flat: [Nq, 3] (float32).

    Returns padded device arrays (no un-padding slice — padded rows/cols have
    mask == 0 so edge indices derived from the padded mask are already valid):
      feat [NUM_FEAT, Nq_pad, Nx_pad] bfloat16   (8 SH l>=1 channels, 8 radial)
      mask [Nq_pad, Nx_pad] int8
    """
    x = jnp.asarray(x, jnp.float32)
    y = jnp.asarray(y_flat, jnp.float32)
    Nx, Nq = x.shape[0], y.shape[0]

    SUB, LANE = 32, 128   # int8 mask sublane tile / lane tile (covers bf16 too)

    # Tile sizes: sublane-aligned query tile, lane-dense field tile.
    tq = min(tq_max, _round_up(Nq, SUB))
    tn = min(tn_max, _round_up(Nx, LANE))
    Nq_pad = _round_up(Nq, tq)
    Nx_pad = _round_up(Nx, tn)

    # Make sure a "parallel" axis has >=2 blocks when the problem allows it, so
    # v7x's two TensorCores both get work (on 1-TC v5e/v6e the extra grid step
    # costs only ~0.35us).
    if Nq_pad // tq == 1 and Nx_pad // tn == 1:
        tn_half = _round_up(pl.cdiv(Nx, 2), LANE)
        tq_half = _round_up(pl.cdiv(Nq, 2), SUB)
        if Nx > tn_half:
            tn = tn_half
            Nx_pad = _round_up(Nx, tn)
        elif Nq > tq_half:
            tq = tq_half
            Nq_pad = _round_up(Nq, tq)

    # Pad with distinct far-away coordinates so every pair involving a padded
    # point falls outside the radius (mask == 0) — no un-padding slice needed.
    x_t = jnp.full((3, Nx_pad), X_PAD, jnp.float32).at[:, :Nx].set(x.T)
    y_p = jnp.full((Nq_pad, 3), Y_PAD, jnp.float32).at[:Nq, :].set(y)

    grid = (Nq_pad // tq, Nx_pad // tn)

    # VMEM budget: double-buffered bf16/int8 output tiles + ~12 live f32
    # elementwise temporaries per tile; stays well under v7x's 64 MiB physical.
    out_tile_bytes = (NUM_FEAT * 2 + 1) * tq * tn
    in_tile_bytes = (3 * tn + tq * 3) * 4
    interm_bytes = 12 * tq * tn * 4
    vmem_limit = 2 * (out_tile_bytes + in_tile_bytes) + interm_bytes + (4 << 20)
    vmem_limit = min(max(vmem_limit, 32 << 20), 48 << 20)

    n_pairs = Nq_pad * Nx_pad
    cost = pl.CostEstimate(
        flops=60 * n_pairs,
        transcendentals=17 * n_pairs,          # 1 rsqrt + 8 exp + 8 recip / pair
        bytes_accessed=(NUM_FEAT * 2 + 1) * n_pairs + 12 * (Nq_pad + Nx_pad),
    )

    # TODO(synk): for very large point clouds on v5e (16 GiB HBM) the wrapper
    # should chunk over query row-blocks and compact each chunk before the next
    # to bound the dense slab size and overlap the PCIe mask transfer.
    feat, mask = pl.pallas_call(
        query_sh_kernel,
        out_shape=(
            jax.ShapeDtypeStruct((NUM_FEAT, Nq_pad, Nx_pad), jnp.bfloat16),
            jax.ShapeDtypeStruct((Nq_pad, Nx_pad), jnp.int8),
        ),
        grid=grid,
        in_specs=[
            pl.BlockSpec((3, tn), lambda i, j: (0, j)),
            pl.BlockSpec((tq, 3), lambda i, j: (i, 0)),
        ],
        out_specs=(
            pl.BlockSpec((NUM_FEAT, tq, tn), lambda i, j: (0, i, j)),
            pl.BlockSpec((tq, tn), lambda i, j: (i, j)),
        ),
        compiler_params=pltpu.CompilerParams(
            dimension_semantics=("parallel", "parallel"),
            vmem_limit_bytes=vmem_limit,
        ),
        cost_estimate=cost,
    )(x_t, y_p)

    return feat, mask


def query_sh_layer(inputs):
    """Forward pass mirroring QuerySHLayer.forward."""
    assert isinstance(inputs, dict)
    x = inputs["pos"]            # [Nx, 3]
    y = inputs["query_pos"]      # [Nt, Ny, 3]
    assert y.ndim == 3
    Nt, Ny = y.shape[0], y.shape[1]
    y_flat = jnp.reshape(jnp.asarray(y), (-1, 3))

    feat, mask = query_sh_dense(x, y_flat)

    # TODO(synk): the dynamically sized radius-graph edge list still needs one
    # small host round-trip (int8 mask only, 1 B/pair) for np.nonzero; the
    # heavy gather stays on device and only the compacted [E, 16] slab leaves
    # the chip. Padded rows/cols are all-zero, so the indices are valid as-is.
    mask_host = np.asarray(jax.device_get(mask))
    edge_src_np, edge_dst_np = np.nonzero(mask_host)   # ordered by y idx, then x idx
    edge_src = edge_src_np.astype(np.int64)
    edge_dst = edge_dst_np.astype(np.int64)

    src_dev = jnp.asarray(edge_src_np, jnp.int32)
    dst_dev = jnp.asarray(edge_dst_np, jnp.int32)
    gathered = jnp.transpose(feat[:, src_dev, dst_dev]).astype(jnp.float32)  # [E, 16]
    n_edges = gathered.shape[0]
    ones = jnp.ones((n_edges, 1), jnp.float32)          # constant l=0 channel
    edge_sh = jnp.concatenate([ones, gathered[:, :SH_NO_L0]], axis=1)    # [E, 9]
    edge_length_embedded = gathered[:, SH_NO_L0:]                         # [E, 8]

    outputs = {
        "N_transforms": Nt,
        "N_query": Ny,
        "irreps_sh": "1x0e+1x1e+1x2e",
        "edge": (edge_src, edge_dst),
        "edge_sh": edge_sh,
        "edge_length_embedded": edge_length_embedded,
    }
    if "feature" in inputs:
        outputs["feature"] = inputs["feature"]
    return outputs


# ---------------------------------------------------------------------------
# Pure-numpy reference (exact same math as the PyTorch module) for validation
# ---------------------------------------------------------------------------
def _reference_dense(x, y_flat):
    x = np.asarray(x, np.float64)
    y = np.asarray(y_flat, np.float64)
    vec = y[:, None, :] - x[None, :, :]               # [Nq, Nx, 3]
    dist2 = np.sum(vec * vec, axis=-1)
    dist = np.sqrt(dist2)
    mask = (dist2 <= RADIUS2).astype(np.float32)
    u = vec / np.maximum(dist, EPS)[..., None]
    ux, uy, uz = u[..., 0], u[..., 1], u[..., 2]
    sh = np.stack([
        np.ones_like(ux), ux, uy, uz,
        SQRT3 * ux * uz, SQRT3 * ux * uy,
        uy * uy - 0.5 * (ux * ux + uz * uz),
        SQRT3 * uy * uz, (SQRT3 / 2.0) * (uz * uz - ux * ux),
    ], axis=0)                                        # [SH, Nq, Nx]

    def sus(t):
        return np.where(t > 0, np.exp(-1.0 / np.where(t > 0, t, 1.0)), 0.0)

    emb = []
    for k in range(NUMBER_OF_BASIS):
        d = (dist - (k + 1) * EMB_STEP) / EMB_STEP
        emb.append(EMB_CONST * sus(d + 1.0) * sus(1.0 - d))
    emb = np.stack(emb, axis=0)                       # [B, Nq, Nx]
    return sh.astype(np.float32), emb.astype(np.float32), mask


def _check_against_reference(pos, query_pos):
    Nx = pos.shape[0]
    Nq = query_pos.shape[0] * query_pos.shape[1]
    feat, mask = query_sh_dense(pos, query_pos.reshape(-1, 3))
    jax.block_until_ready((feat, mask))
    feat_np = np.asarray(feat[:, :Nq, :Nx], np.float32)   # test-only slice
    mask_np = np.asarray(mask[:Nq, :Nx], np.float32)
    sh_ref, emb_ref, mask_ref = _reference_dense(pos, query_pos.reshape(-1, 3))
    np.testing.assert_allclose(mask_np, mask_ref, atol=0)
    # bf16 outputs + approx reciprocal -> bf16-level tolerances
    np.testing.assert_allclose(feat_np[:SH_NO_L0], sh_ref[1:], rtol=1e-2, atol=2e-2)
    np.testing.assert_allclose(feat_np[SH_NO_L0:], emb_ref, rtol=1e-2, atol=3e-2)
    # padded rows/cols must be masked out
    full_mask = np.asarray(mask, np.float32)
    assert full_mask[Nq:, :].sum() == 0 and full_mask[:, Nx:].sum() == 0


if __name__ == "__main__":
    key = jax.random.PRNGKey(0)
    k1, k2, k3 = jax.random.split(key, 3)

    Nx, Nt, Ny = 128, 2, 8                            # Nq = 16
    pos = jax.random.uniform(k1, (Nx, 3), dtype=jnp.float32)
    query_pos = jax.random.uniform(k2, (Nt, Ny, 3), dtype=jnp.float32)
    feature = jax.random.normal(k3, (Nx, 4), dtype=jnp.float32)

    inputs = {"pos": pos, "query_pos": query_pos, "feature": feature}
    out = query_sh_layer(inputs)
    jax.block_until_ready((out["edge_sh"], out["edge_length_embedded"]))

    # validate dense kernel output against numpy reference
    _check_against_reference(pos, query_pos)

    # validate an unaligned / padded / multi-block-grid configuration as well
    k4, k5 = jax.random.split(k3)
    pos2 = jax.random.uniform(k4, (200, 3), dtype=jnp.float32)
    query2 = jax.random.uniform(k5, (3, 5, 3), dtype=jnp.float32)
    _check_against_reference(pos2, query2)

    assert out["edge_sh"].shape[1] == SH_DIM
    assert out["edge_length_embedded"].shape[1] == NUMBER_OF_BASIS
    assert out["edge"][0].shape == out["edge"][1].shape
    assert bool(jnp.all(out["edge_sh"][:, 0] == 1.0))
    print("KERNEL_OK")
</pallas_src>

<mosaic_0001>
module attributes {stable_mosaic.version = 11 : i64} {
  func.func @query_sh_kernel(%arg0: i32, %arg1: i32, %arg2: memref<3x128xf32, #tpu.memory_space<vmem>>, %arg3: memref<32x3xf32, #tpu.memory_space<vmem>>, %arg4: memref<16x32x128xbf16, #tpu.memory_space<vmem>>, %arg5: memref<32x128xi8, #tpu.memory_space<vmem>>) attributes {dimension_semantics = [#tpu.dimension_semantics<parallel>, #tpu.dimension_semantics<parallel>], iteration_bounds = array<i64: 1, 1>, scalar_prefetch = 0 : i64, scratch_operands = 0 : i64, tpu.core_type = #tpu.core_type<tc>, window_params = [{transform_indices = @transform_0, window_bounds = array<i64: 3, 128>}, {transform_indices = @transform_1, window_bounds = array<i64: 32, 3>}, {transform_indices = @transform_2, window_bounds = array<i64: 16, 32, 128>}, {transform_indices = @transform_3, window_bounds = array<i64: 32, 128>}]} {
    %c0 = arith.constant 0 : index
    %c0_0 = arith.constant 0 : index
    %0 = vector.load %arg2[%c0, %c0_0] : memref<3x128xf32, #tpu.memory_space<vmem>>, vector<3x128xf32>
    %c0_1 = arith.constant 0 : index
    %c0_2 = arith.constant 0 : index
    %1 = vector.load %arg3[%c0_1, %c0_2] : memref<32x3xf32, #tpu.memory_space<vmem>>, vector<32x3xf32>
    %2 = vector.extract_strided_slice %1 {offsets = [0, 0], sizes = [32, 1], strides = [1, 1]} : vector<32x3xf32> to vector<32x1xf32>
    %3 = vector.extract_strided_slice %0 {offsets = [0, 0], sizes = [1, 128], strides = [1, 1]} : vector<3x128xf32> to vector<1x128xf32>
    %4 = vector.broadcast %2 : vector<32x1xf32> to vector<32x128xf32>
    %5 = vector.broadcast %3 : vector<1x128xf32> to vector<32x128xf32>
    %6 = arith.subf %4, %5 : vector<32x128xf32>
    %7 = vector.extract_strided_slice %1 {offsets = [0, 1], sizes = [32, 1], strides = [1, 1]} : vector<32x3xf32> to vector<32x1xf32>
    %8 = vector.extract_strided_slice %0 {offsets = [1, 0], sizes = [1, 128], strides = [1, 1]} : vector<3x128xf32> to vector<1x128xf32>
    %9 = vector.broadcast %7 : vector<32x1xf32> to vector<32x128xf32>
    %10 = vector.broadcast %8 : vector<1x128xf32> to vector<32x128xf32>
    %11 = arith.subf %9, %10 : vector<32x128xf32>
    %12 = vector.extract_strided_slice %1 {offsets = [0, 2], sizes = [32, 1], strides = [1, 1]} : vector<32x3xf32> to vector<32x1xf32>
    %13 = vector.extract_strided_slice %0 {offsets = [2, 0], sizes = [1, 128], strides = [1, 1]} : vector<3x128xf32> to vector<1x128xf32>
    %14 = vector.broadcast %12 : vector<32x1xf32> to vector<32x128xf32>
    %15 = vector.broadcast %13 : vector<1x128xf32> to vector<32x128xf32>
    %16 = arith.subf %14, %15 : vector<32x128xf32>
    %17 = arith.mulf %6, %6 : vector<32x128xf32>
    %18 = arith.mulf %11, %11 : vector<32x128xf32>
    %19 = arith.addf %17, %18 : vector<32x128xf32>
    %20 = arith.mulf %16, %16 : vector<32x128xf32>
    %21 = arith.addf %19, %20 : vector<32x128xf32>
    %cst = arith.constant 1.166400e+00 : f32
    %22 = vector.broadcast %cst : f32 to vector<32x128xf32>
    %23 = arith.cmpf ole, %21, %22 : vector<32x128xf32>
    %c1_i32 = arith.constant 1 : i32
    %c0_i32 = arith.constant 0 : i32
    %24 = vector.broadcast %c1_i32 : i32 to vector<32x128xi32>
    %25 = vector.broadcast %c0_i32 : i32 to vector<32x128xi32>
    %26 = arith.select %23, %24, %25 : vector<32x128xi1>, vector<32x128xi32>
    %27 = arith.trunci %26 : vector<32x128xi32> to vector<32x128xi8>
    %c0_3 = arith.constant 0 : index
    %c0_4 = arith.constant 0 : index
    %28 = vector.load %arg5[%c0_3, %c0_4] : memref<32x128xi8, #tpu.memory_space<vmem>>, vector<32x128xi8>
    tpu.vector_store %arg5[%c0_3, %c0_4], %27 {strides = array<i32>} : memref<32x128xi8, #tpu.memory_space<vmem>>, vector<32x128xi8>,
    %cst_5 = arith.constant 1.000000e-24 : f32
    %29 = vector.broadcast %cst_5 : f32 to vector<32x128xf32>
    %30 = arith.maximumf %21, %29 : vector<32x128xf32>
    %31 = math.rsqrt %30 : vector<32x128xf32>
    %32 = arith.mulf %21, %31 : vector<32x128xf32>
    %33 = arith.mulf %6, %31 : vector<32x128xf32>
    %34 = arith.mulf %11, %31 : vector<32x128xf32>
    %35 = arith.mulf %16, %31 : vector<32x128xf32>
    %36 = arith.truncf %33 : vector<32x128xf32> to vector<32x128xbf16>
    %c0_6 = arith.constant 0 : index
    %c0_7 = arith.constant 0 : index
    %c0_8 = arith.constant 0 : index
    %37 = vector.load %arg4[%c0_6, %c0_7, %c0_8] : memref<16x32x128xbf16, #tpu.memory_space<vmem>>, vector<1x32x128xbf16>
    %38 = vector.shape_cast %37 : vector<1x32x128xbf16> to vector<32x128xbf16>
    %39 = vector.shape_cast %36 : vector<32x128xbf16> to vector<1x32x128xbf16>
    tpu.vector_store %arg4[%c0_6, %c0_7, %c0_8], %39 {strides = array<i32>} : memref<16x32x128xbf16, #tpu.memory_space<vmem>>, vector<1x32x128xbf16>,
    %40 = arith.truncf %34 : vector<32x128xf32> to vector<32x128xbf16>
    %c1 = arith.constant 1 : index
    %c0_9 = arith.constant 0 : index
    %c0_10 = arith.constant 0 : index
    %41 = vector.load %arg4[%c1, %c0_9, %c0_10] : memref<16x32x128xbf16, #tpu.memory_space<vmem>>, vector<1x32x128xbf16>
    %42 = vector.shape_cast %41 : vector<1x32x128xbf16> to vector<32x128xbf16>
    %43 = vector.shape_cast %40 : vector<32x128xbf16> to vector<1x32x128xbf16>
    tpu.vector_store %arg4[%c1, %c0_9, %c0_10], %43 {strides = array<i32>} : memref<16x32x128xbf16, #tpu.memory_space<vmem>>, vector<1x32x128xbf16>,
    %44 = arith.truncf %35 : vector<32x128xf32> to vector<32x128xbf16>
    %c2 = arith.constant 2 : index
    %c0_11 = arith.constant 0 : index
    %c0_12 = arith.constant 0 : index
    %45 = vector.load %arg4[%c2, %c0_11, %c0_12] : memref<16x32x128xbf16, #tpu.memory_space<vmem>>, vector<1x32x128xbf16>
    %46 = vector.shape_cast %45 : vector<1x32x128xbf16> to vector<32x128xbf16>
    %47 = vector.shape_cast %44 : vector<32x128xbf16> to vector<1x32x128xbf16>
    tpu.vector_store %arg4[%c2, %c0_11, %c0_12], %47 {strides = array<i32>} : memref<16x32x128xbf16, #tpu.memory_space<vmem>>, vector<1x32x128xbf16>,
    %cst_13 = arith.constant 1.73205078 : f32
    %48 = vector.broadcast %cst_13 : f32 to vector<32x128xf32>
    %49 = arith.mulf %48, %33 : vector<32x128xf32>
    %50 = arith.mulf %49, %35 : vector<32x128xf32>
    %51 = arith.truncf %50 : vector<32x128xf32> to vector<32x128xbf16>
    %c3 = arith.constant 3 : index
    %c0_14 = arith.constant 0 : index
    %c0_15 = arith.constant 0 : index
    %52 = vector.load %arg4[%c3, %c0_14, %c0_15] : memref<16x32x128xbf16, #tpu.memory_space<vmem>>, vector<1x32x128xbf16>
    %53 = vector.shape_cast %52 : vector<1x32x128xbf16> to vector<32x128xbf16>
    %54 = vector.shape_cast %51 : vector<32x128xbf16> to vector<1x32x128xbf16>
    tpu.vector_store %arg4[%c3, %c0_14, %c0_15], %54 {strides = array<i32>} : memref<16x32x128xbf16, #tpu.memory_space<vmem>>, vector<1x32x128xbf16>,
    %cst_16 = arith.constant 1.73205078 : f32
    %55 = vector.broadcast %cst_16 : f32 to vector<32x128xf32>
    %56 = arith.mulf %55, %33 : vector<32x128xf32>
    %57 = arith.mulf %56, %34 : vector<32x128xf32>
    %58 = arith.truncf %57 : vector<32x128xf32> to vector<32x128xbf16>
    %c4 = arith.constant 4 : index
    %c0_17 = arith.constant 0 : index
    %c0_18 = arith.constant 0 : index
    %59 = vector.load %arg4[%c4, %c0_17, %c0_18] : memref<16x32x128xbf16, #tpu.memory_space<vmem>>, vector<1x32x128xbf16>
    %60 = vector.shape_cast %59 : vector<1x32x128xbf16> to vector<32x128xbf16>
    %61 = vector.shape_cast %58 : vector<32x128xbf16> to vector<1x32x128xbf16>
    tpu.vector_store %arg4[%c4, %c0_17, %c0_18], %61 {strides = array<i32>} : memref<16x32x128xbf16, #tpu.memory_space<vmem>>, vector<1x32x128xbf16>,
    %62 = arith.mulf %34, %34 : vector<32x128xf32>
    %63 = arith.mulf %33, %33 : vector<32x128xf32>
    %64 = arith.mulf %35, %35 : vector<32x128xf32>
    %65 = arith.addf %63, %64 : vector<32x128xf32>
    %cst_19 = arith.constant 5.000000e-01 : f32
    %66 = vector.broadcast %cst_19 : f32 to vector<32x128xf32>
    %67 = arith.mulf %66, %65 : vector<32x128xf32>
    %68 = arith.subf %62, %67 : vector<32x128xf32>
    %69 = arith.truncf %68 : vector<32x128xf32> to vector<32x128xbf16>
    %c5 = arith.constant 5 : index
    %c0_20 = arith.constant 0 : index
    %c0_21 = arith.constant 0 : index
    %70 = vector.load %arg4[%c5, %c0_20, %c0_21] : memref<16x32x128xbf16, #tpu.memory_space<vmem>>, vector<1x32x128xbf16>
    %71 = vector.shape_cast %70 : vector<1x32x128xbf16> to vector<32x128xbf16>
    %72 = vector.shape_cast %69 : vector<32x128xbf16> to vector<1x32x128xbf16>
    tpu.vector_store %arg4[%c5, %c0_20, %c0_21], %72 {strides = array<i32>} : memref<16x32x128xbf16, #tpu.memory_space<vmem>>, vector<1x32x128xbf16>,
    %cst_22 = arith.constant 1.73205078 : f32
    %73 = vector.broadcast %cst_22 : f32 to vector<32x128xf32>
    %74 = arith.mulf %73, %34 : vector<32x128xf32>
    %75 = arith.mulf %74, %35 : vector<32x128xf32>
    %76 = arith.truncf %75 : vector<32x128xf32> to vector<32x128xbf16>
    %c6 = arith.constant 6 : index
    %c0_23 = arith.constant 0 : index
    %c0_24 = arith.constant 0 : index
    %77 = vector.load %arg4[%c6, %c0_23, %c0_24] : memref<16x32x128xbf16, #tpu.memory_space<vmem>>, vector<1x32x128xbf16>
    %78 = vector.shape_cast %77 : vector<1x32x128xbf16> to vector<32x128xbf16>
    %79 = vector.shape_cast %76 : vector<32x128xbf16> to vector<1x32x128xbf16>
    tpu.vector_store %arg4[%c6, %c0_23, %c0_24], %79 {strides = array<i32>} : memref<16x32x128xbf16, #tpu.memory_space<vmem>>, vector<1x32x128xbf16>,
    %80 = arith.mulf %35, %35 : vector<32x128xf32>
    %81 = arith.mulf %33, %33 : vector<32x128xf32>
    %82 = arith.subf %80, %81 : vector<32x128xf32>
    %cst_25 = arith.constant 0.866025388 : f32
    %83 = vector.broadcast %cst_25 : f32 to vector<32x128xf32>
    %84 = arith.mulf %83, %82 : vector<32x128xf32>
    %85 = arith.truncf %84 : vector<32x128xf32> to vector<32x128xbf16>
    %c7 = arith.constant 7 : index
    %c0_26 = arith.constant 0 : index
    %c0_27 = arith.constant 0 : index
    %86 = vector.load %arg4[%c7, %c0_26, %c0_27] : memref<16x32x128xbf16, #tpu.memory_space<vmem>>, vector<1x32x128xbf16>
    %87 = vector.shape_cast %86 : vector<1x32x128xbf16> to vector<32x128xbf16>
    %88 = vector.shape_cast %85 : vector<32x128xbf16> to vector<1x32x128xbf16>
    tpu.vector_store %arg4[%c7, %c0_26, %c0_27], %88 {strides = array<i32>} : memref<16x32x128xbf16, #tpu.memory_space<vmem>>, vector<1x32x128xbf16>,
    %cst_28 = arith.constant 1.000000e+01 : f32
    %89 = vector.broadcast %cst_28 : f32 to vector<32x128xf32>
    %90 = arith.mulf %32, %89 : vector<32x128xf32>
    %cst_29 = arith.constant 1.000000e+00 : f32
    %91 = vector.broadcast %cst_29 : f32 to vector<32x128xf32>
    %92 = arith.subf %90, %91 : vector<32x128xf32>
    %93 = arith.mulf %92, %92 : vector<32x128xf32>
    %cst_30 = arith.constant 1.000000e+00 : f32
    %94 = vector.broadcast %cst_30 : f32 to vector<32x128xf32>
    %95 = arith.subf %94, %93 : vector<32x128xf32>
    %cst_31 = arith.constant 1.000000e-03 : f32
    %96 = vector.broadcast %cst_31 : f32 to vector<32x128xf32>
    %97 = arith.maximumf %95, %96 : vector<32x128xf32>
    %98 = tpu.reciprocal %97 {approx = true} : vector<32x128xf32> -> vector<32x128xf32>
    %cst_32 = arith.constant -2.000000e+00 : f32
    %99 = vector.broadcast %cst_32 : f32 to vector<32x128xf32>
    %100 = arith.mulf %99, %98 : vector<32x128xf32>
    %101 = math.exp %100 : vector<32x128xf32>
    %cst_33 = arith.constant 23.8537464 : f32
    %102 = vector.broadcast %cst_33 : f32 to vector<32x128xf32>
    %103 = arith.mulf %102, %101 : vector<32x128xf32>
    %104 = arith.truncf %103 : vector<32x128xf32> to vector<32x128xbf16>
    %c8 = arith.constant 8 : index
    %c0_34 = arith.constant 0 : index
    %c0_35 = arith.constant 0 : index
    %105 = vector.load %arg4[%c8, %c0_34, %c0_35] : memref<16x32x128xbf16, #tpu.memory_space<vmem>>, vector<1x32x128xbf16>
    %106 = vector.shape_cast %105 : vector<1x32x128xbf16> to vector<32x128xbf16>
    %107 = vector.shape_cast %104 : vector<32x128xbf16> to vector<1x32x128xbf16>
    tpu.vector_store %arg4[%c8, %c0_34, %c0_35], %107 {strides = array<i32>} : memref<16x32x128xbf16, #tpu.memory_space<vmem>>, vector<1x32x128xbf16>,
    %cst_36 = arith.constant 2.000000e+00 : f32
    %108 = vector.broadcast %cst_36 : f32 to vector<32x128xf32>
    %109 = arith.subf %90, %108 : vector<32x128xf32>
    %110 = arith.mulf %109, %109 : vector<32x128xf32>
    %cst_37 = arith.constant 1.000000e+00 : f32
    %111 = vector.broadcast %cst_37 : f32 to vector<32x128xf32>
    %112 = arith.subf %111, %110 : vector<32x128xf32>
    %cst_38 = arith.constant 1.000000e-03 : f32
    %113 = vector.broadcast %cst_38 : f32 to vector<32x128xf32>
    %114 = arith.maximumf %112, %113 : vector<32x128xf32>
    %115 = tpu.reciprocal %114 {approx = true} : vector<32x128xf32> -> vector<32x128xf32>
    %cst_39 = arith.constant -2.000000e+00 : f32
    %116 = vector.broadcast %cst_39 : f32 to vector<32x128xf32>
    %117 = arith.mulf %116, %115 : vector<32x128xf32>
    %118 = math.exp %117 : vector<32x128xf32>
    %cst_40 = arith.constant 23.8537464 : f32
    %119 = vector.broadcast %cst_40 : f32 to vector<32x128xf32>
    %120 = arith.mulf %119, %118 : vector<32x128xf32>
    %121 = arith.truncf %120 : vector<32x128xf32> to vector<32x128xbf16>
    %c9 = arith.constant 9 : index
    %c0_41 = arith.constant 0 : index
    %c0_42 = arith.constant 0 : index
    %122 = vector.load %arg4[%c9, %c0_41, %c0_42] : memref<16x32x128xbf16, #tpu.memory_space<vmem>>, vector<1x32x128xbf16>
    %123 = vector.shape_cast %122 : vector<1x32x128xbf16> to vector<32x128xbf16>
    %124 = vector.shape_cast %121 : vector<32x128xbf16> to vector<1x32x128xbf16>
    tpu.vector_store %arg4[%c9, %c0_41, %c0_42], %124 {strides = array<i32>} : memref<16x32x128xbf16, #tpu.memory_space<vmem>>, vector<1x32x128xbf16>,
    %cst_43 = arith.constant 3.000000e+00 : f32
    %125 = vector.broadcast %cst_43 : f32 to vector<32x128xf32>
    %126 = arith.subf %90, %125 : vector<32x128xf32>
    %127 = arith.mulf %126, %126 : vector<32x128xf32>
    %cst_44 = arith.constant 1.000000e+00 : f32
    %128 = vector.broadcast %cst_44 : f32 to vector<32x128xf32>
    %129 = arith.subf %128, %127 : vector<32x128xf32>
    %cst_45 = arith.constant 1.000000e-03 : f32
    %130 = vector.broadcast %cst_45 : f32 to vector<32x128xf32>
    %131 = arith.maximumf %129, %130 : vector<32x128xf32>
    %132 = tpu.reciprocal %131 {approx = true} : vector<32x128xf32> -> vector<32x128xf32>
    %cst_46 = arith.constant -2.000000e+00 : f32
    %133 = vector.broadcast %cst_46 : f32 to vector<32x128xf32>
    %134 = arith.mulf %133, %132 : vector<32x128xf32>
    %135 = math.exp %134 : vector<32x128xf32>
    %cst_47 = arith.constant 23.8537464 : f32
    %136 = vector.broadcast %cst_47 : f32 to vector<32x128xf32>
    %137 = arith.mulf %136, %135 : vector<32x128xf32>
    %138 = arith.truncf %137 : vector<32x128xf32> to vector<32x128xbf16>
    %c10 = arith.constant 10 : index
    %c0_48 = arith.constant 0 : index
    %c0_49 = arith.constant 0 : index
    %139 = vector.load %arg4[%c10, %c0_48, %c0_49] : memref<16x32x128xbf16, #tpu.memory_space<vmem>>, vector<1x32x128xbf16>
    %140 = vector.shape_cast %139 : vector<1x32x128xbf16> to vector<32x128xbf16>
    %141 = vector.shape_cast %138 : vector<32x128xbf16> to vector<1x32x128xbf16>
    tpu.vector_store %arg4[%c10, %c0_48, %c0_49], %141 {strides = array<i32>} : memref<16x32x128xbf16, #tpu.memory_space<vmem>>, vector<1x32x128xbf16>,
    %cst_50 = arith.constant 4.000000e+00 : f32
    %142 = vector.broadcast %cst_50 : f32 to vector<32x128xf32>
    %143 = arith.subf %90, %142 : vector<32x128xf32>
    %144 = arith.mulf %143, %143 : vector<32x128xf32>
    %cst_51 = arith.constant 1.000000e+00 : f32
    %145 = vector.broadcast %cst_51 : f32 to vector<32x128xf32>
    %146 = arith.subf %145, %144 : vector<32x128xf32>
    %cst_52 = arith.constant 1.000000e-03 : f32
    %147 = vector.broadcast %cst_52 : f32 to vector<32x128xf32>
    %148 = arith.maximumf %146, %147 : vector<32x128xf32>
    %149 = tpu.reciprocal %148 {approx = true} : vector<32x128xf32> -> vector<32x128xf32>
    %cst_53 = arith.constant -2.000000e+00 : f32
    %150 = vector.broadcast %cst_53 : f32 to vector<32x128xf32>
    %151 = arith.mulf %150, %149 : vector<32x128xf32>
    %152 = math.exp %151 : vector<32x128xf32>
    %cst_54 = arith.constant 23.8537464 : f32
    %153 = vector.broadcast %cst_54 : f32 to vector<32x128xf32>
    %154 = arith.mulf %153, %152 : vector<32x128xf32>
    %155 = arith.truncf %154 : vector<32x128xf32> to vector<32x128xbf16>
    %c11 = arith.constant 11 : index
    %c0_55 = arith.constant 0 : index
    %c0_56 = arith.constant 0 : index
    %156 = vector.load %arg4[%c11, %c0_55, %c0_56] : memref<16x32x128xbf16, #tpu.memory_space<vmem>>, vector<1x32x128xbf16>
    %157 = vector.shape_cast %156 : vector<1x32x128xbf16> to vector<32x128xbf16>
    %158 = vector.shape_cast %155 : vector<32x128xbf16> to vector<1x32x128xbf16>
    tpu.vector_store %arg4[%c11, %c0_55, %c0_56], %158 {strides = array<i32>} : memref<16x32x128xbf16, #tpu.memory_space<vmem>>, vector<1x32x128xbf16>,
    %cst_57 = arith.constant 5.000000e+00 : f32
    %159 = vector.broadcast %cst_57 : f32 to vector<32x128xf32>
    %160 = arith.subf %90, %159 : vector<32x128xf32>
    %161 = arith.mulf %160, %160 : vector<32x128xf32>
    %cst_58 = arith.constant 1.000000e+00 : f32
    %162 = vector.broadcast %cst_58 : f32 to vector<32x128xf32>
    %163 = arith.subf %162, %161 : vector<32x128xf32>
    %cst_59 = arith.constant 1.000000e-03 : f32
    %164 = vector.broadcast %cst_59 : f32 to vector<32x128xf32>
    %165 = arith.maximumf %163, %164 : vector<32x128xf32>
    %166 = tpu.reciprocal %165 {approx = true} : vector<32x128xf32> -> vector<32x128xf32>
    %cst_60 = arith.constant -2.000000e+00 : f32
    %167 = vector.broadcast %cst_60 : f32 to vector<32x128xf32>
    %168 = arith.mulf %167, %166 : vector<32x128xf32>
    %169 = math.exp %168 : vector<32x128xf32>
    %cst_61 = arith.constant 23.8537464 : f32
    %170 = vector.broadcast %cst_61 : f32 to vector<32x128xf32>
    %171 = arith.mulf %170, %169 : vector<32x128xf32>
    %172 = arith.truncf %171 : vector<32x128xf32> to vector<32x128xbf16>
    %c12 = arith.constant 12 : index
    %c0_62 = arith.constant 0 : index
    %c0_63 = arith.constant 0 : index
    %173 = vector.load %arg4[%c12, %c0_62, %c0_63] : memref<16x32x128xbf16, #tpu.memory_space<vmem>>, vector<1x32x128xbf16>
    %174 = vector.shape_cast %173 : vector<1x32x128xbf16> to vector<32x128xbf16>
    %175 = vector.shape_cast %172 : vector<32x128xbf16> to vector<1x32x128xbf16>
    tpu.vector_store %arg4[%c12, %c0_62, %c0_63], %175 {strides = array<i32>} : memref<16x32x128xbf16, #tpu.memory_space<vmem>>, vector<1x32x128xbf16>,
    %cst_64 = arith.constant 6.000000e+00 : f32
    %176 = vector.broadcast %cst_64 : f32 to vector<32x128xf32>
    %177 = arith.subf %90, %176 : vector<32x128xf32>
    %178 = arith.mulf %177, %177 : vector<32x128xf32>
    %cst_65 = arith.constant 1.000000e+00 : f32
    %179 = vector.broadcast %cst_65 : f32 to vector<32x128xf32>
    %180 = arith.subf %179, %178 : vector<32x128xf32>
    %cst_66 = arith.constant 1.000000e-03 : f32
    %181 = vector.broadcast %cst_66 : f32 to vector<32x128xf32>
    %182 = arith.maximumf %180, %181 : vector<32x128xf32>
    %183 = tpu.reciprocal %182 {approx = true} : vector<32x128xf32> -> vector<32x128xf32>
    %cst_67 = arith.constant -2.000000e+00 : f32
    %184 = vector.broadcast %cst_67 : f32 to vector<32x128xf32>
    %185 = arith.mulf %184, %183 : vector<32x128xf32>
    %186 = math.exp %185 : vector<32x128xf32>
    %cst_68 = arith.constant 23.8537464 : f32
    %187 = vector.broadcast %cst_68 : f32 to vector<32x128xf32>
    %188 = arith.mulf %187, %186 : vector<32x128xf32>
    %189 = arith.truncf %188 : vector<32x128xf32> to vector<32x128xbf16>
    %c13 = arith.constant 13 : index
    %c0_69 = arith.constant 0 : index
    %c0_70 = arith.constant 0 : index
    %190 = vector.load %arg4[%c13, %c0_69, %c0_70] : memref<16x32x128xbf16, #tpu.memory_space<vmem>>, vector<1x32x128xbf16>
    %191 = vector.shape_cast %190 : vector<1x32x128xbf16> to vector<32x128xbf16>
    %192 = vector.shape_cast %189 : vector<32x128xbf16> to vector<1x32x128xbf16>
    tpu.vector_store %arg4[%c13, %c0_69, %c0_70], %192 {strides = array<i32>} : memref<16x32x128xbf16, #tpu.memory_space<vmem>>, vector<1x32x128xbf16>,
    %cst_71 = arith.constant 7.000000e+00 : f32
    %193 = vector.broadcast %cst_71 : f32 to vector<32x128xf32>
    %194 = arith.subf %90, %193 : vector<32x128xf32>
    %195 = arith.mulf %194, %194 : vector<32x128xf32>
    %cst_72 = arith.constant 1.000000e+00 : f32
    %196 = vector.broadcast %cst_72 : f32 to vector<32x128xf32>
    %197 = arith.subf %196, %195 : vector<32x128xf32>
    %cst_73 = arith.constant 1.000000e-03 : f32
    %198 = vector.broadcast %cst_73 : f32 to vector<32x128xf32>
    %199 = arith.maximumf %197, %198 : vector<32x128xf32>
    %200 = tpu.reciprocal %199 {approx = true} : vector<32x128xf32> -> vector<32x128xf32>
    %cst_74 = arith.constant -2.000000e+00 : f32
    %201 = vector.broadcast %cst_74 : f32 to vector<32x128xf32>
    %202 = arith.mulf %201, %200 : vector<32x128xf32>
    %203 = math.exp %202 : vector<32x128xf32>
    %cst_75 = arith.constant 23.8537464 : f32
    %204 = vector.broadcast %cst_75 : f32 to vector<32x128xf32>
    %205 = arith.mulf %204, %203 : vector<32x128xf32>
    %206 = arith.truncf %205 : vector<32x128xf32> to vector<32x128xbf16>
    %c14 = arith.constant 14 : index
    %c0_76 = arith.constant 0 : index
    %c0_77 = arith.constant 0 : index
    %207 = vector.load %arg4[%c14, %c0_76, %c0_77] : memref<16x32x128xbf16, #tpu.memory_space<vmem>>, vector<1x32x128xbf16>
    %208 = vector.shape_cast %207 : vector<1x32x128xbf16> to vector<32x128xbf16>
    %209 = vector.shape_cast %206 : vector<32x128xbf16> to vector<1x32x128xbf16>
    tpu.vector_store %arg4[%c14, %c0_76, %c0_77], %209 {strides = array<i32>} : memref<16x32x128xbf16, #tpu.memory_space<vmem>>, vector<1x32x128xbf16>,
    %cst_78 = arith.constant 8.000000e+00 : f32
    %210 = vector.broadcast %cst_78 : f32 to vector<32x128xf32>
    %211 = arith.subf %90, %210 : vector<32x128xf32>
    %212 = arith.mulf %211, %211 : vector<32x128xf32>
    %cst_79 = arith.constant 1.000000e+00 : f32
    %213 = vector.broadcast %cst_79 : f32 to vector<32x128xf32>
    %214 = arith.subf %213, %212 : vector<32x128xf32>
    %cst_80 = arith.constant 1.000000e-03 : f32
    %215 = vector.broadcast %cst_80 : f32 to vector<32x128xf32>
    %216 = arith.maximumf %214, %215 : vector<32x128xf32>
    %217 = tpu.reciprocal %216 {approx = true} : vector<32x128xf32> -> vector<32x128xf32>
    %cst_81 = arith.constant -2.000000e+00 : f32
    %218 = vector.broadcast %cst_81 : f32 to vector<32x128xf32>
    %219 = arith.mulf %218, %217 : vector<32x128xf32>
    %220 = math.exp %219 : vector<32x128xf32>
    %cst_82 = arith.constant 23.8537464 : f32
    %221 = vector.broadcast %cst_82 : f32 to vector<32x128xf32>
    %222 = arith.mulf %221, %220 : vector<32x128xf32>
    %223 = arith.truncf %222 : vector<32x128xf32> to vector<32x128xbf16>
    %c15 = arith.constant 15 : index
    %c0_83 = arith.constant 0 : index
    %c0_84 = arith.constant 0 : index
    %224 = vector.load %arg4[%c15, %c0_83, %c0_84] : memref<16x32x128xbf16, #tpu.memory_space<vmem>>, vector<1x32x128xbf16>
    %225 = vector.shape_cast %224 : vector<1x32x128xbf16> to vector<32x128xbf16>
    %226 = vector.shape_cast %223 : vector<32x128xbf16> to vector<1x32x128xbf16>
    tpu.vector_store %arg4[%c15, %c0_83, %c0_84], %226 {strides = array<i32>} : memref<16x32x128xbf16, #tpu.memory_space<vmem>>, vector<1x32x128xbf16>,
    return
  }
  func.func @transform_0(%arg0: i32, %arg1: i32) -> (i32, i32) {
    %c0_i32 = arith.constant 0 : i32
    %c0_i32_0 = arith.constant 0 : i32
    return %c0_i32, %arg1 : i32, i32
  }
  func.func @transform_1(%arg0: i32, %arg1: i32) -> (i32, i32) {
    %c0_i32 = arith.constant 0 : i32
    %c0_i32_0 = arith.constant 0 : i32
    return %arg0, %c0_i32 : i32, i32
  }
  func.func @transform_2(%arg0: i32, %arg1: i32) -> (i32, i32, i32) {
    %c0_i32 = arith.constant 0 : i32
    %c0_i32_0 = arith.constant 0 : i32
    return %c0_i32, %arg0, %arg1 : i32, i32, i32
  }
  func.func @transform_3(%arg0: i32, %arg1: i32) -> (i32, i32) {
    %c0_i32 = arith.constant 0 : i32
    return %arg0, %arg1 : i32, i32
  }
}

</mosaic_0001>

<llo_original>
// kernel: tpu_custom_call.1
$region0: #{tpu_custom_call.1}
  #allocation0 [shape = 'u32[]', space=smem, size = 0x4, offset = 0x4, fixed_abs, tag = 'smem constant byte address 0x4 - core index']
  #allocation1 [shape = 'u32[144,128]{1,0:T(1,128)}', space=vmem, size = 0x12000, scoped, tag = 'internal scratch']
  %s0 = inlined_call_operand.vmem [shape: f32[3,128], index: 0, kind: input, shape index: {}]
  %s1 = inlined_call_operand.vmem [shape: f32[32,3], index: 1, kind: input, shape index: {}]
  %s2 = inlined_call_operand.hbm [shape: bf16[16,32,128], index: 2, kind: output, shape index: {0}]
  %s3 = inlined_call_operand.hbm [shape: s8[32,128], index: 3, kind: output, shape index: {1}]
  %4 = xla_tuple %s2, %s3
  %s5 = sld [smem:[#allocation0]]
  $region26: #{tpu_custom_call.1} parent=0
    _
  %s7 = ssub.s32 1, %s5
  %s8 = scalar_select 0, %s7, %s5
  $region1: #{tpu_custom_call.1} parent=0
    #allocation2 [shape = 'u8[131072]{0}', space=vmem, size = 0x20000, scoped, tag = 'output window, operand 0, single buffered']
    #allocation3 [shape = 's32[1]{0}', space=sflag, size = 0x4, scoped, tag = 'scoped memory for tpu_custom_call.1']
    #allocation4 [shape = 'u8[4096]{0}', space=vmem, size = 0x1000, scoped, tag = 'output window, operand 1, single buffered']
    #allocation5 [shape = 's32[1]{0}', space=sflag, size = 0x4, scoped, tag = 'scoped memory for tpu_custom_call.1']
    %9 = vsyncpa [#allocation3], 0
    %10 = vsyncpa [#allocation5], 0
    // Predicated region
    $region2: #{tpu_custom_call.1} parent=1 // pred_check
      _
    $region3: #{tpu_custom_call.1} parent=1 // pred_check_branch
      %12 = sbr.rel (0) target = $region5
    $region4: #{tpu_custom_call.1} parent=1 // pred_region
      _
    $region5: #{tpu_custom_call.1} parent=1 // pred_fallthru
      _
    // Predicated region
    $region6: #{tpu_custom_call.1} parent=1 // pred_check
      _
    $region7: #{tpu_custom_call.1} parent=1 // pred_check_branch
      %14 = sbr.rel (0) target = $region9
    $region8: #{tpu_custom_call.1} parent=1 // pred_region
      _
    $region9: #{tpu_custom_call.1} parent=1 // pred_fallthru
      _
    %v15 = vld [vmem:[%s0] sm:$0x7]
    %v16 = vld [vmem:[%s1] sm:$0xff]
    %v17 = vld [vmem:[%s1 + $0x8] sm:$0xff]
    %v18 = vld [vmem:[%s1 + $0x10] sm:$0xff]
    %v19 = vld [vmem:[%s1 + $0x18] sm:$0xff]
    %21 = vset.pattern.permute.xlu0 0
    %22 = vperm.xlu0 %21, %v16
    %v23 = vpop.permute.xlu0 %22
    %26 = vset.pattern.permute.xlu0 0
    %27 = vperm.xlu0 %26, %v17
    %v28 = vpop.permute.xlu0 %27
    %31 = vset.pattern.permute.xlu0 0
    %32 = vperm.xlu0 %31, %v18
    %v33 = vpop.permute.xlu0 %32
    %36 = vset.pattern.permute.xlu0 0
    %37 = vperm.xlu0 %36, %v19
    %v38 = vpop.permute.xlu0 %37
    %v40 = vlaneseq
    %v41 = vshrl.u32 %v40, 7
    %v42 = vsub.s32 0, %v41
    %v43 = vrot.slane %v15, %v42
    %v44 = vsub.f32 %v23, %v43
    %v45 = vsub.f32 %v28, %v43
    %v46 = vsub.f32 %v33, %v43
    %v47 = vsub.f32 %v38, %v43
    %48 = vset.pattern.permute.xlu0 1
    %49 = vperm.xlu0 %48, %v16
    %v50 = vpop.permute.xlu0 %49
    %52 = vset.pattern.permute.xlu0 1
    %53 = vperm.xlu0 %52, %v17
    %v54 = vpop.permute.xlu0 %53
    %56 = vset.pattern.permute.xlu0 1
    %57 = vperm.xlu0 %56, %v18
    %v58 = vpop.permute.xlu0 %57
    %60 = vset.pattern.permute.xlu0 1
    %61 = vperm.xlu0 %60, %v19
    %v62 = vpop.permute.xlu0 %61
    %v64 = vlaneseq
    %v65 = vshrl.u32 %v64, 7
    %v66 = vsub.s32 1, %v65
    %v67 = vrot.slane %v15, %v66
    %v68 = vsub.f32 %v50, %v67
    %v69 = vsub.f32 %v54, %v67
    %v70 = vsub.f32 %v58, %v67
    %v71 = vsub.f32 %v62, %v67
    %72 = vset.pattern.permute.xlu0 2
    %73 = vperm.xlu0 %72, %v16
    %v74 = vpop.permute.xlu0 %73
    %76 = vset.pattern.permute.xlu0 2
    %77 = vperm.xlu0 %76, %v17
    %v78 = vpop.permute.xlu0 %77
    %80 = vset.pattern.permute.xlu0 2
    %81 = vperm.xlu0 %80, %v18
    %v82 = vpop.permute.xlu0 %81
    %84 = vset.pattern.permute.xlu0 2
    %85 = vperm.xlu0 %84, %v19
    %v86 = vpop.permute.xlu0 %85
    %v88 = vlaneseq
    %v89 = vshrl.u32 %v88, 7
    %v90 = vsub.s32 2, %v89
    %v91 = vrot.slane %v15, %v90
    %v92 = vsub.f32 %v74, %v91
    %v93 = vsub.f32 %v78, %v91
    %v94 = vsub.f32 %v82, %v91
    %v95 = vsub.f32 %v86, %v91
    %v96 = vmul.f32 %v44, %v44
    %v97 = vmul.f32 %v45, %v45
    %v98 = vmul.f32 %v46, %v46
    %v99 = vmul.f32 %v47, %v47
    %v100 = vmul.f32 %v68, %v68
    %v101 = vmul.f32 %v69, %v69
    %v102 = vmul.f32 %v70, %v70
    %v103 = vmul.f32 %v71, %v71
    %v104 = vadd.f32 %v96, %v100
    %v105 = vadd.f32 %v97, %v101
    %v106 = vadd.f32 %v98, %v102
    %v107 = vadd.f32 %v99, %v103
    %v108 = vmul.f32 %v92, %v92
    %v109 = vmul.f32 %v93, %v93
    %v110 = vmul.f32 %v94, %v94
    %v111 = vmul.f32 %v95, %v95
    %v112 = vadd.f32 %v104, %v108
    %v113 = vadd.f32 %v105, %v109
    %v114 = vadd.f32 %v106, %v110
    %v115 = vadd.f32 %v107, %v111
    %vm116 = vcmp.le.f32.partialorder %v112, 1.1664
    %vm117 = vcmp.le.f32.partialorder %v113, 1.1664
    %vm118 = vcmp.le.f32.partialorder %v114, 1.1664
    %vm119 = vcmp.le.f32.partialorder %v115, 1.1664
    %v120 = vsel %vm116, 1, 0
    %v121 = vsel %vm117, 1, 0
    %v122 = vsel %vm118, 1, 0
    %v123 = vsel %vm119, 1, 0
    %v124 = vpack.c.b16 %v121, %v120
    %v125 = vpack.c.b16 %v123, %v122
    %v126 = vpack.c.b8 %v125, %v124
    %127 = vst [vmem:[#allocation4] sm:$0xff] %v126
    %v128 = vmax.f32 %v112, 1e-24
    %v129 = vmax.f32 %v113, 1e-24
    %v130 = vmax.f32 %v114, 1e-24
    %v131 = vmax.f32 %v115, 1e-24
    %v132 = vrsqrt.pop %v128
    %v133 = vrsqrt.pop %v129
    %v134 = vrsqrt.pop %v130
    %v135 = vrsqrt.pop %v131
    %v136 = vmul.f32 %v112, %v132
    %v137 = vmul.f32 %v113, %v133
    %v138 = vmul.f32 %v114, %v134
    %v139 = vmul.f32 %v115, %v135
    %v140 = vmul.f32 %v44, %v132
    %v141 = vmul.f32 %v45, %v133
    %v142 = vmul.f32 %v46, %v134
    %v143 = vmul.f32 %v47, %v135
    %v144 = vmul.f32 %v68, %v132
    %v145 = vmul.f32 %v69, %v133
    %v146 = vmul.f32 %v70, %v134
    %v147 = vmul.f32 %v71, %v135
    %v148 = vmul.f32 %v92, %v132
    %v149 = vmul.f32 %v93, %v133
    %v150 = vmul.f32 %v94, %v134
    %v151 = vmul.f32 %v95, %v135
    %v152 = vpack.c.bf16 %v141, %v140
    %v153 = vpack.c.bf16 %v143, %v142
    %154 = vst [vmem:[#allocation2] sm:$0xff] %v152
    %155 = vst [vmem:[#allocation2 + $0x8] sm:$0xff] %v153
    %v156 = vpack.c.bf16 %v145, %v144
    %v157 = vpack.c.bf16 %v147, %v146
    %s158 = scalar_lea.vmem [#allocation2], 16
    %159 = vst [vmem:[%s158] sm:$0xff] %v156
    %160 = vst [vmem:[%s158 + $0x8] sm:$0xff] %v157
    %v161 = vpack.c.bf16 %v149, %v148
    %v162 = vpack.c.bf16 %v151, %v150
    %s163 = scalar_lea.vmem [#allocation2], 32
    %164 = vst [vmem:[%s163] sm:$0xff] %v161
    %165 = vst [vmem:[%s163 + $0x8] sm:$0xff] %v162
    %v166 = vmul.f32 %v140, 1.7320508
    %v167 = vmul.f32 %v141, 1.7320508
    %v168 = vmul.f32 %v142, 1.7320508
    %v169 = vmul.f32 %v143, 1.7320508
    %v170 = vmul.f32 %v166, %v148
    %v171 = vmul.f32 %v167, %v149
    %v172 = vmul.f32 %v168, %v150
    %v173 = vmul.f32 %v169, %v151
    %v174 = vpack.c.bf16 %v171, %v170
    %v175 = vpack.c.bf16 %v173, %v172
    %s176 = scalar_lea.vmem [#allocation2], 48
    %177 = vst [vmem:[%s176] sm:$0xff] %v174
    %178 = vst [vmem:[%s176 + $0x8] sm:$0xff] %v175
    %v179 = vmul.f32 %v166, %v144
    %v180 = vmul.f32 %v167, %v145
    %v181 = vmul.f32 %v168, %v146
    %v182 = vmul.f32 %v169, %v147
    %v183 = vpack.c.bf16 %v180, %v179
    %v184 = vpack.c.bf16 %v182, %v181
    %s185 = scalar_lea.vmem [#allocation2], 64
    %186 = vst [vmem:[%s185] sm:$0xff] %v183
    %187 = vst [vmem:[%s185 + $0x8] sm:$0xff] %v184
    %v188 = vmul.f32 %v144, %v144
    %v189 = vmul.f32 %v145, %v145
    %v190 = vmul.f32 %v146, %v146
    %v191 = vmul.f32 %v147, %v147
    %v192 = vmul.f32 %v140, %v140
    %v193 = vmul.f32 %v141, %v141
    %v194 = vmul.f32 %v142, %v142
    %v195 = vmul.f32 %v143, %v143
    %v196 = vmul.f32 %v148, %v148
    %v197 = vmul.f32 %v149, %v149
    %v198 = vmul.f32 %v150, %v150
    %v199 = vmul.f32 %v151, %v151
    %v200 = vadd.f32 %v192, %v196
    %v201 = vadd.f32 %v193, %v197
    %v202 = vadd.f32 %v194, %v198
    %v203 = vadd.f32 %v195, %v199
    %v204 = vmul.f32 %v200, 0.5
    %v205 = vmul.f32 %v201, 0.5
    %v206 = vmul.f32 %v202, 0.5
    %v207 = vmul.f32 %v203, 0.5
    %v208 = vsub.f32 %v188, %v204
    %v209 = vsub.f32 %v189, %v205
    %v210 = vsub.f32 %v190, %v206
    %v211 = vsub.f32 %v191, %v207
    %v212 = vpack.c.bf16 %v209, %v208
    %v213 = vpack.c.bf16 %v211, %v210
    %s214 = scalar_lea.vmem [#allocation2], 80
    %215 = vst [vmem:[%s214] sm:$0xff] %v212
    %216 = vst [vmem:[%s214 + $0x8] sm:$0xff] %v213
    %v217 = vmul.f32 %v144, 1.7320508
    %v218 = vmul.f32 %v145, 1.7320508
    %v219 = vmul.f32 %v146, 1.7320508
    %v220 = vmul.f32 %v147, 1.7320508
    %v221 = vmul.f32 %v217, %v148
    %v222 = vmul.f32 %v218, %v149
    %v223 = vmul.f32 %v219, %v150
    %v224 = vmul.f32 %v220, %v151
    %v225 = vpack.c.bf16 %v222, %v221
    %v226 = vpack.c.bf16 %v224, %v223
    %s227 = scalar_lea.vmem [#allocation2], 96
    %228 = vst [vmem:[%s227] sm:$0xff] %v225
    %229 = vst [vmem:[%s227 + $0x8] sm:$0xff] %v226
    %v230 = vsub.f32 %v196, %v192
    %v231 = vsub.f32 %v197, %v193
    %v232 = vsub.f32 %v198, %v194
    %v233 = vsub.f32 %v199, %v195
    %v234 = vmul.f32 %v230, 0.8660254
    %v235 = vmul.f32 %v231, 0.8660254
    %v236 = vmul.f32 %v232, 0.8660254
    %v237 = vmul.f32 %v233, 0.8660254
    %v238 = vpack.c.bf16 %v235, %v234
    %v239 = vpack.c.bf16 %v237, %v236
    %s240 = scalar_lea.vmem [#allocation2], 112
    %241 = vst [vmem:[%s240] sm:$0xff] %v238
    %242 = vst [vmem:[%s240 + $0x8] sm:$0xff] %v239
    %v243 = vmul.f32 %v136, 10.0
    %v244 = vmul.f32 %v137, 10.0
    %v245 = vmul.f32 %v138, 10.0
    %v246 = vmul.f32 %v139, 10.0
    %v247 = vsub.f32 %v243, 1.0
    %v248 = vsub.f32 %v244, 1.0
    %v249 = vsub.f32 %v245, 1.0
    %v250 = vsub.f32 %v246, 1.0
    %v251 = vmul.f32 %v247, %v247
    %v252 = vmul.f32 %v248, %v248
    %v253 = vmul.f32 %v249, %v249
    %v254 = vmul.f32 %v250, %v250
    %v255 = vsub.f32 1.0, %v251
    %v256 = vsub.f32 1.0, %v252
    %v257 = vsub.f32 1.0, %v253
    %v258 = vsub.f32 1.0, %v254
    %v259 = vmax.f32 %v255, 0.001
    %v260 = vmax.f32 %v256, 0.001
    %v261 = vmax.f32 %v257, 0.001
    %v262 = vmax.f32 %v258, 0.001
    %v263 = vrcp.pop %v259
    %v264 = vrcp.pop %v260
    %v265 = vrcp.pop %v261
    %v266 = vrcp.pop %v262
    %v267 = vmul.f32 %v263, -2.0
    %v268 = vmul.f32 %v264, -2.0
    %v269 = vmul.f32 %v265, -2.0
    %v270 = vmul.f32 %v266, -2.0
    %v271 = vmul.f32 %v267, 1.442695
    %v272 = vpow.pop %v271
    %v273 = vmul.f32 %v268, 1.442695
    %v274 = vpow.pop %v273
    %v275 = vmul.f32 %v269, 1.442695
    %v276 = vpow.pop %v275
    %v277 = vmul.f32 %v270, 1.442695
    %v278 = vpow.pop %v277
    %v279 = vmul.f32 %v272, 23.853746
    %v280 = vmul.f32 %v274, 23.853746
    %v281 = vmul.f32 %v276, 23.853746
    %v282 = vmul.f32 %v278, 23.853746
    %v283 = vpack.c.bf16 %v280, %v279
    %v284 = vpack.c.bf16 %v282, %v281
    %s285 = scalar_lea.vmem [#allocation2], 128
    %286 = vst [vmem:[%s285] sm:$0xff] %v283
    %287 = vst [vmem:[%s285 + $0x8] sm:$0xff] %v284
    %v288 = vsub.f32 %v243, 2.0
    %v289 = vsub.f32 %v244, 2.0
    %v290 = vsub.f32 %v245, 2.0
    %v291 = vsub.f32 %v246, 2.0
    %v292 = vmul.f32 %v288, %v288
    %v293 = vmul.f32 %v289, %v289
    %v294 = vmul.f32 %v290, %v290
    %v295 = vmul.f32 %v291, %v291
    %v296 = vsub.f32 1.0, %v292
    %v297 = vsub.f32 1.0, %v293
    %v298 = vsub.f32 1.0, %v294
    %v299 = vsub.f32 1.0, %v295
    %v300 = vmax.f32 %v296, 0.001
    %v301 = vmax.f32 %v297, 0.001
    %v302 = vmax.f32 %v298, 0.001
    %v303 = vmax.f32 %v299, 0.001
    %v304 = vrcp.pop %v300
    %v305 = vrcp.pop %v301
    %v306 = vrcp.pop %v302
    %v307 = vrcp.pop %v303
    %v308 = vmul.f32 %v304, -2.0
    %v309 = vmul.f32 %v305, -2.0
    %v310 = vmul.f32 %v306, -2.0
    %v311 = vmul.f32 %v307, -2.0
    %v312 = vmul.f32 %v308, 1.442695
    %v313 = vpow.pop %v312
    %v314 = vmul.f32 %v309, 1.442695
    %v315 = vpow.pop %v314
    %v316 = vmul.f32 %v310, 1.442695
    %v317 = vpow.pop %v316
    %v318 = vmul.f32 %v311, 1.442695
    %v319 = vpow.pop %v318
    %v320 = vmul.f32 %v313, 23.853746
    %v321 = vmul.f32 %v315, 23.853746
    %v322 = vmul.f32 %v317, 23.853746
    %v323 = vmul.f32 %v319, 23.853746
    %v324 = vpack.c.bf16 %v321, %v320
    %v325 = vpack.c.bf16 %v323, %v322
    %s326 = scalar_lea.vmem [#allocation2], 144
    %327 = vst [vmem:[%s326] sm:$0xff] %v324
    %328 = vst [vmem:[%s326 + $0x8] sm:$0xff] %v325
    %v329 = vsub.f32 %v243, 3.0
    %v330 = vsub.f32 %v244, 3.0
    %v331 = vsub.f32 %v245, 3.0
    %v332 = vsub.f32 %v246, 3.0
    %v333 = vmul.f32 %v329, %v329
    %v334 = vmul.f32 %v330, %v330
    %v335 = vmul.f32 %v331, %v331
    %v336 = vmul.f32 %v332, %v332
    %v337 = vsub.f32 1.0, %v333
    %v338 = vsub.f32 1.0, %v334
    %v339 = vsub.f32 1.0, %v335
    %v340 = vsub.f32 1.0, %v336
    %v341 = vmax.f32 %v337, 0.001
    %v342 = vmax.f32 %v338, 0.001
    %v343 = vmax.f32 %v339, 0.001
    %v344 = vmax.f32 %v340, 0.001
    %v345 = vrcp.pop %v341
    %v346 = vrcp.pop %v342
    %v347 = vrcp.pop %v343
    %v348 = vrcp.pop %v344
    %v349 = vmul.f32 %v345, -2.0
    %v350 = vmul.f32 %v346, -2.0
    %v351 = vmul.f32 %v347, -2.0
    %v352 = vmul.f32 %v348, -2.0
    %v353 = vmul.f32 %v349, 1.442695
    %v354 = vpow.pop %v353
    %v355 = vmul.f32 %v350, 1.442695
    %v356 = vpow.pop %v355
    %v357 = vmul.f32 %v351, 1.442695
    %v358 = vpow.pop %v357
    %v359 = vmul.f32 %v352, 1.442695
    %v360 = vpow.pop %v359
    %v361 = vmul.f32 %v354, 23.853746
    %v362 = vmul.f32 %v356, 23.853746
    %v363 = vmul.f32 %v358, 23.853746
    %v364 = vmul.f32 %v360, 23.853746
    %v365 = vpack.c.bf16 %v362, %v361
    %v366 = vpack.c.bf16 %v364, %v363
    %s367 = scalar_lea.vmem [#allocation2], 160
    %368 = vst [vmem:[%s367] sm:$0xff] %v365
    %369 = vst [vmem:[%s367 + $0x8] sm:$0xff] %v366
    %v370 = vsub.f32 %v243, 4.0
    %v371 = vsub.f32 %v244, 4.0
    %v372 = vsub.f32 %v245, 4.0
    %v373 = vsub.f32 %v246, 4.0
    %v374 = vmul.f32 %v370, %v370
    %v375 = vmul.f32 %v371, %v371
    %v376 = vmul.f32 %v372, %v372
    %v377 = vmul.f32 %v373, %v373
    %v378 = vsub.f32 1.0, %v374
    %v379 = vsub.f32 1.0, %v375
    %v380 = vsub.f32 1.0, %v376
    %v381 = vsub.f32 1.0, %v377
    %v382 = vmax.f32 %v378, 0.001
    %v383 = vmax.f32 %v379, 0.001
    %v384 = vmax.f32 %v380, 0.001
    %v385 = vmax.f32 %v381, 0.001
    %v386 = vrcp.pop %v382
    %v387 = vrcp.pop %v383
    %v388 = vrcp.pop %v384
    %v389 = vrcp.pop %v385
    %v390 = vmul.f32 %v386, -2.0
    %v391 = vmul.f32 %v387, -2.0
    %v392 = vmul.f32 %v388, -2.0
    %v393 = vmul.f32 %v389, -2.0
    %v394 = vmul.f32 %v390, 1.442695
    %v395 = vpow.pop %v394
    %v396 = vmul.f32 %v391, 1.442695
    %v397 = vpow.pop %v396
    %v398 = vmul.f32 %v392, 1.442695
    %v399 = vpow.pop %v398
    %v400 = vmul.f32 %v393, 1.442695
    %v401 = vpow.pop %v400
    %v402 = vmul.f32 %v395, 23.853746
    %v403 = vmul.f32 %v397, 23.853746
    %v404 = vmul.f32 %v399, 23.853746
    %v405 = vmul.f32 %v401, 23.853746
    %v406 = vpack.c.bf16 %v403, %v402
    %v407 = vpack.c.bf16 %v405, %v404
    %s408 = scalar_lea.vmem [#allocation2], 176
    %409 = vst [vmem:[%s408] sm:$0xff] %v406
    %410 = vst [vmem:[%s408 + $0x8] sm:$0xff] %v407
    %v411 = vsub.f32 %v243, 5.0
    %v412 = vsub.f32 %v244, 5.0
    %v413 = vsub.f32 %v245, 5.0
    %v414 = vsub.f32 %v246, 5.0
    %v415 = vmul.f32 %v411, %v411
    %v416 = vmul.f32 %v412, %v412
    %v417 = vmul.f32 %v413, %v413
    %v418 = vmul.f32 %v414, %v414
    %v419 = vsub.f32 1.0, %v415
    %v420 = vsub.f32 1.0, %v416
    %v421 = vsub.f32 1.0, %v417
    %v422 = vsub.f32 1.0, %v418
    %v423 = vmax.f32 %v419, 0.001
    %v424 = vmax.f32 %v420, 0.001
    %v425 = vmax.f32 %v421, 0.001
    %v426 = vmax.f32 %v422, 0.001
    %v427 = vrcp.pop %v423
    %v428 = vrcp.pop %v424
    %v429 = vrcp.pop %v425
    %v430 = vrcp.pop %v426
    %v431 = vmul.f32 %v427, -2.0
    %v432 = vmul.f32 %v428, -2.0
    %v433 = vmul.f32 %v429, -2.0
    %v434 = vmul.f32 %v430, -2.0
    %v435 = vmul.f32 %v431, 1.442695
    %v436 = vpow.pop %v435
    %v437 = vmul.f32 %v432, 1.442695
    %v438 = vpow.pop %v437
    %v439 = vmul.f32 %v433, 1.442695
    %v440 = vpow.pop %v439
    %v441 = vmul.f32 %v434, 1.442695
    %v442 = vpow.pop %v441
    %v443 = vmul.f32 %v436, 23.853746
    %v444 = vmul.f32 %v438, 23.853746
    %v445 = vmul.f32 %v440, 23.853746
    %v446 = vmul.f32 %v442, 23.853746
    %v447 = vpack.c.bf16 %v444, %v443
    %v448 = vpack.c.bf16 %v446, %v445
    %s449 = scalar_lea.vmem [#allocation2], 192
    %450 = vst [vmem:[%s449] sm:$0xff] %v447
    %451 = vst [vmem:[%s449 + $0x8] sm:$0xff] %v448
    %v452 = vsub.f32 %v243, 6.0
    %v453 = vsub.f32 %v244, 6.0
    %v454 = vsub.f32 %v245, 6.0
    %v455 = vsub.f32 %v246, 6.0
    %v456 = vmul.f32 %v452, %v452
    %v457 = vmul.f32 %v453, %v453
    %v458 = vmul.f32 %v454, %v454
    %v459 = vmul.f32 %v455, %v455
    %v460 = vsub.f32 1.0, %v456
    %v461 = vsub.f32 1.0, %v457
    %v462 = vsub.f32 1.0, %v458
    %v463 = vsub.f32 1.0, %v459
    %v464 = vmax.f32 %v460, 0.001
    %v465 = vmax.f32 %v461, 0.001
    %v466 = vmax.f32 %v462, 0.001
    %v467 = vmax.f32 %v463, 0.001
    %v468 = vrcp.pop %v464
    %v469 = vrcp.pop %v465
    %v470 = vrcp.pop %v466
    %v471 = vrcp.pop %v467
    %v472 = vmul.f32 %v468, -2.0
    %v473 = vmul.f32 %v469, -2.0
    %v474 = vmul.f32 %v470, -2.0
    %v475 = vmul.f32 %v471, -2.0
    %v476 = vmul.f32 %v472, 1.442695
    %v477 = vpow.pop %v476
    %v478 = vmul.f32 %v473, 1.442695
    %v479 = vpow.pop %v478
    %v480 = vmul.f32 %v474, 1.442695
    %v481 = vpow.pop %v480
    %v482 = vmul.f32 %v475, 1.442695
    %v483 = vpow.pop %v482
    %v484 = vmul.f32 %v477, 23.853746
    %v485 = vmul.f32 %v479, 23.853746
    %v486 = vmul.f32 %v481, 23.853746
    %v487 = vmul.f32 %v483, 23.853746
    %v488 = vpack.c.bf16 %v485, %v484
    %v489 = vpack.c.bf16 %v487, %v486
    %s490 = scalar_lea.vmem [#allocation2], 208
    %491 = vst [vmem:[%s490] sm:$0xff] %v488
    %492 = vst [vmem:[%s490 + $0x8] sm:$0xff] %v489
    %v493 = vsub.f32 %v243, 7.0
    %v494 = vsub.f32 %v244, 7.0
    %v495 = vsub.f32 %v245, 7.0
    %v496 = vsub.f32 %v246, 7.0
    %v497 = vmul.f32 %v493, %v493
    %v498 = vmul.f32 %v494, %v494
    %v499 = vmul.f32 %v495, %v495
    %v500 = vmul.f32 %v496, %v496
    %v501 = vsub.f32 1.0, %v497
    %v502 = vsub.f32 1.0, %v498
    %v503 = vsub.f32 1.0, %v499
    %v504 = vsub.f32 1.0, %v500
    %v505 = vmax.f32 %v501, 0.001
    %v506 = vmax.f32 %v502, 0.001
    %v507 = vmax.f32 %v503, 0.001
    %v508 = vmax.f32 %v504, 0.001
    %v509 = vrcp.pop %v505
    %v510 = vrcp.pop %v506
    %v511 = vrcp.pop %v507
    %v512 = vrcp.pop %v508
    %v513 = vmul.f32 %v509, -2.0
    %v514 = vmul.f32 %v510, -2.0
    %v515 = vmul.f32 %v511, -2.0
    %v516 = vmul.f32 %v512, -2.0
    %v517 = vmul.f32 %v513, 1.442695
    %v518 = vpow.pop %v517
    %v519 = vmul.f32 %v514, 1.442695
    %v520 = vpow.pop %v519
    %v521 = vmul.f32 %v515, 1.442695
    %v522 = vpow.pop %v521
    %v523 = vmul.f32 %v516, 1.442695
    %v524 = vpow.pop %v523
    %v525 = vmul.f32 %v518, 23.853746
    %v526 = vmul.f32 %v520, 23.853746
    %v527 = vmul.f32 %v522, 23.853746
    %v528 = vmul.f32 %v524, 23.853746
    %v529 = vpack.c.bf16 %v526, %v525
    %v530 = vpack.c.bf16 %v528, %v527
    %s531 = scalar_lea.vmem [#allocation2], 224
    %532 = vst [vmem:[%s531] sm:$0xff] %v529
    %533 = vst [vmem:[%s531 + $0x8] sm:$0xff] %v530
    %v534 = vsub.f32 %v243, 8.0
    %v535 = vsub.f32 %v244, 8.0
    %v536 = vsub.f32 %v245, 8.0
    %v537 = vsub.f32 %v246, 8.0
    %v538 = vmul.f32 %v534, %v534
    %v539 = vmul.f32 %v535, %v535
    %v540 = vmul.f32 %v536, %v536
    %v541 = vmul.f32 %v537, %v537
    %v542 = vsub.f32 1.0, %v538
    %v543 = vsub.f32 1.0, %v539
    %v544 = vsub.f32 1.0, %v540
    %v545 = vsub.f32 1.0, %v541
    %v546 = vmax.f32 %v542, 0.001
    %v547 = vmax.f32 %v543, 0.001
    %v548 = vmax.f32 %v544, 0.001
    %v549 = vmax.f32 %v545, 0.001
    %v550 = vrcp.pop %v546
    %v551 = vrcp.pop %v547
    %v552 = vrcp.pop %v548
    %v553 = vrcp.pop %v549
    %v554 = vmul.f32 %v550, -2.0
    %v555 = vmul.f32 %v551, -2.0
    %v556 = vmul.f32 %v552, -2.0
    %v557 = vmul.f32 %v553, -2.0
    %v558 = vmul.f32 %v554, 1.442695
    %v559 = vpow.pop %v558
    %v560 = vmul.f32 %v555, 1.442695
    %v561 = vpow.pop %v560
    %v562 = vmul.f32 %v556, 1.442695
    %v563 = vpow.pop %v562
    %v564 = vmul.f32 %v557, 1.442695
    %v565 = vpow.pop %v564
    %v566 = vmul.f32 %v559, 23.853746
    %v567 = vmul.f32 %v561, 23.853746
    %v568 = vmul.f32 %v563, 23.853746
    %v569 = vmul.f32 %v565, 23.853746
    %v570 = vpack.c.bf16 %v567, %v566
    %v571 = vpack.c.bf16 %v569, %v568
    %s572 = scalar_lea.vmem [#allocation2], 240
    %573 = vst [vmem:[%s572] sm:$0xff] %v570
    %574 = vst [vmem:[%s572 + $0x8] sm:$0xff] %v571
    // Predicated region
    $region10: #{tpu_custom_call.1} parent=1 // pred_check
      _
    $region11: #{tpu_custom_call.1} parent=1 // pred_check_branch
      %576 = sbr.rel (0) target = $region13
    $region12: #{tpu_custom_call.1} parent=1 // pred_region
      %s578 = ssub.s32 4096, 4096
      %579 = vsyncadd [#allocation3], %s578
      %s580 = sshll.u32 [#allocation2], 4
      %s581 = int_to_ptr.vmem [resolvable:$true] %s580
      %586 = dma.vmem_to_hbm [thread:$0]  %s581, 4096, %s2, [#allocation3], 128, 128, 8
    $region13: #{tpu_custom_call.1} parent=1 // pred_fallthru
      _
    // Predicated region
    $region14: #{tpu_custom_call.1} parent=1 // pred_check
      _
    $region15: #{tpu_custom_call.1} parent=1 // pred_check_branch
      %588 = sbr.rel (0) target = $region17
    $region16: #{tpu_custom_call.1} parent=1 // pred_region
      %s590 = ssub.s32 128, 128
      %591 = vsyncadd [#allocation5], %s590
      %s593 = sshll.u32 [#allocation4], 4
      %s594 = int_to_ptr.vmem [resolvable:$true] %s593
      %596 = dma.vmem_to_hbm [thread:$0]  %s594, 128, %s3, [#allocation5]
    $region17: #{tpu_custom_call.1} parent=1 // pred_fallthru
      _
    // Predicated region
    $region18: #{tpu_custom_call.1} parent=1 // pred_check
      _
    $region19: #{tpu_custom_call.1} parent=1 // pred_check_branch
      %598 = sbr.rel (0) target = $region21
    $region20: #{tpu_custom_call.1} parent=1 // pred_region
      %599 = dma.done [#allocation3], 4096
    $region21: #{tpu_custom_call.1} parent=1 // pred_fallthru
      _
    // Predicated region
    $region22: #{tpu_custom_call.1} parent=1 // pred_check
      _
    $region23: #{tpu_custom_call.1} parent=1 // pred_check_branch
      %601 = sbr.rel (0) target = $region25
    $region24: #{tpu_custom_call.1} parent=1 // pred_region
      %602 = dma.done [#allocation5], 128
    $region25: #{tpu_custom_call.1} parent=1 // pred_fallthru
      _
    %603 = vsyncpa [#allocation3], 1
    %604 = vsyncpa [#allocation5], 1

</llo_original>
